<compile_context>
chip_gen: v7x
topology: tpu7x:2x2x1
jax: 0.10.0
libtpu: 0.0.40
codegen_flags: <defaults>
</compile_context>

<pallas_src>
import math

import jax
import jax.numpy as jnp
from jax import lax
from jax.experimental import pallas as pl
from jax.experimental.pallas import tpu as pltpu


def lrr_kernel(x_ref, v_ref, y_ref, acc_ref):
    # x_ref: (TM, TK)  v_ref: (1, TK)  y_ref: (1, TM)  acc_ref: (1, TM) f32
    k = pl.program_id(1)

    @pl.when(k == 0)
    def _():
        acc_ref[...] = jnp.zeros_like(acc_ref)

    # Contract the last dims of both operands (MXU-native "trans_b" form);
    # no transpose is materialized in VMEM.  f32 accumulation.
    acc_ref[...] += lax.dot_general(
        v_ref[...],
        x_ref[...],
        dimension_numbers=(((1,), (1,)), ((), ())),
        preferred_element_type=jnp.float32,
    )

    @pl.when(k == pl.num_programs(1) - 1)
    def _():
        y_ref[...] = acc_ref[...].astype(y_ref.dtype)


def _round_up(n, m):
    return ((n + m - 1) // m) * m


def _round_down(n, m):
    return (n // m) * m


def _vmem_capacity_bytes():
    try:
        return int(pltpu.get_tpu_info().vmem_capacity_bytes)
    except Exception:
        return 64 * 1024 * 1024  # conservative default (v7x per-TensorCore VMEM)


def _choose_tiles(batch, dim_input, itemsize, block_budget_bytes):
    """Pick (TM, TK): lane-dense batch tile and a reduction tile.

    TM is a multiple of 128 (unmasked lane-dense output stores, aligned bf16
    sublane packing).  TK is either the full dim_input or a 128-multiple that
    divides dim_input exactly (so a ragged K block can never mix OOB garbage
    into valid output lanes).
    """
    ceil_b = _round_up(batch, 128)
    row_bytes = max(dim_input * itemsize, 1)

    # Preferred: full-K blocks (single reduction step per batch tile).
    max_rows = block_budget_bytes // row_bytes
    if max_rows >= 128:
        tm = min(_round_down(max_rows, 128), ceil_b)
        # Keep >= 4 grid steps so both v7x TensorCores get work and the
        # double-buffered DMA has something to overlap (harmless on v5e/v6e).
        tm = min(tm, max(128, _round_down(ceil_b // 4, 128)))
        return max(tm, 128), dim_input

    # K too large for a 128-row full-K block: tile the reduction axis.
    if dim_input % 128 == 0:
        tm = max(128, min(512, max(128, _round_down(ceil_b // 4, 128)), ceil_b))
        max_tk = max(128, _round_down(block_budget_bytes // (tm * itemsize), 128))
        n128 = dim_input // 128
        best = 1
        d = 1
        while d * d <= n128:
            if n128 % d == 0:
                for c in (d, n128 // d):
                    if c * 128 <= max_tk and c > best:
                        best = c
            d += 1
        return tm, best * 128

    # TODO(synk): dim_input not a multiple of 128 AND too large for a 128-row
    # full-K block would need a wrapper-side K pad or in-kernel lane masking;
    # fall back to a full-K block and rely on vmem_limit_bytes.
    return 128, dim_input


def _lrr_matvec(x, v):
    """y = x @ v.T via Pallas.  x: (batch, K) native dtype, v: (1, K)."""
    batch, dim_input = x.shape
    assert v.shape == (1, dim_input)
    v = v.astype(x.dtype)  # tiny row; keeps dot_general operand dtypes equal
    itemsize = jnp.dtype(x.dtype).itemsize

    vmem_cap = _vmem_capacity_bytes()
    # ~40 MiB on v7x (64 MiB physical), 48 MiB on v5e/v6e (128 MiB physical).
    vmem_limit = min(48 * 1024 * 1024, (vmem_cap * 5) // 8)
    block_budget = min(16 * 1024 * 1024, vmem_limit // 3)  # per x buffer (2x buffered)

    tm, tk = _choose_tiles(batch, dim_input, itemsize, block_budget)
    num_m = pl.cdiv(batch, tm)
    num_k = pl.cdiv(dim_input, tk)

    cost = pl.CostEstimate(
        flops=2 * batch * dim_input,
        transcendentals=0,
        bytes_accessed=(batch * dim_input * itemsize
                        + dim_input * itemsize
                        + batch * itemsize),
    )

    y_wide = pl.pallas_call(
        lrr_kernel,
        out_shape=jax.ShapeDtypeStruct((1, batch), x.dtype),
        grid_spec=pltpu.PrefetchScalarGridSpec(
            num_scalar_prefetch=0,
            grid=(num_m, num_k),
            in_specs=[
                pl.BlockSpec((tm, tk), lambda i, k: (i, k)),  # x tiles (pipelined)
                pl.BlockSpec((1, tk), lambda i, k: (0, k)),   # fused weight row
            ],
            out_specs=pl.BlockSpec((1, tm), lambda i, k: (0, i)),  # lane-dense output
            scratch_shapes=[pltpu.VMEM((1, tm), jnp.float32)],     # f32 accumulator
        ),
        compiler_params=pltpu.CompilerParams(
            dimension_semantics=("parallel", "arbitrary"),
            vmem_limit_bytes=vmem_limit,
        ),
        cost_estimate=cost,
    )(x, v)

    # (1, batch) and (batch, 1) share the same row-major layout -> free reshape.
    return y_wide.reshape(batch, 1)


def make_lrr_forward(B_weight, w_weight):
    """Pre-fuse the two bias-free Linears once (weights are static).

    Returns a jitted forward(x) that runs a single bandwidth-bound matvec.
    """
    dim_hidden, dim_input = B_weight.shape
    assert w_weight.shape == (1, dim_hidden)
    v = jnp.dot(
        w_weight.astype(jnp.float32),
        B_weight.astype(jnp.float32),
        preferred_element_type=jnp.float32,
    )  # (1, dim_input), computed once at setup time

    @jax.jit
    def forward(x):
        # x arrives in its native dtype; pass bf16 for half the HBM traffic.
        return _lrr_matvec(x, v)

    return forward


def lrr_forward(x, B_weight, w_weight):
    """One-shot convenience API (recomputes the tiny w@B fusion per call)."""
    v = jnp.dot(
        w_weight.astype(jnp.float32),
        B_weight.astype(jnp.float32),
        preferred_element_type=jnp.float32,
    )
    return _lrr_matvec(x, v)


if __name__ == "__main__":
    # Small shapes consistent with the module's forward (batch, dim_input).
    batch = 200          # ragged on purpose: exercises the partial final tile
    dim_input = 256
    dim_hidden = 64

    key = jax.random.PRNGKey(0)
    k_x, k_B, k_w = jax.random.split(key, 3)

    # Deterministic parameter init mirroring nn.init.normal_ std scaling.
    B_weight = (jax.random.normal(k_B, (dim_hidden, dim_input), dtype=jnp.float32)
                * (1.0 / math.sqrt(dim_hidden * dim_input)))
    w_weight = (jax.random.normal(k_w, (1, dim_hidden), dtype=jnp.float32)
                * (1.0 / math.sqrt(dim_hidden)))

    x = jax.random.normal(k_x, (batch, dim_input), dtype=jnp.float32)

    forward = make_lrr_forward(B_weight, w_weight)
    y = jax.block_until_ready(forward(x))

    # Reference (original PyTorch semantics) in plain f32 JAX.
    y_ref = (x @ B_weight.T) @ w_weight.T
    assert y.shape == (batch, 1)
    assert jnp.allclose(y, y_ref, atol=5e-3, rtol=3e-2), float(jnp.max(jnp.abs(y - y_ref)))

    print("KERNEL_OK")
</pallas_src>

<mosaic_0001>
module attributes {stable_mosaic.version = 11 : i64} {
  func.func @lrr_kernel(%arg0: i32, %arg1: i32, %arg2: memref<128x256xf32, #tpu.memory_space<vmem>>, %arg3: memref<1x256xf32, #tpu.memory_space<vmem>>, %arg4: memref<1x128xf32, #tpu.memory_space<vmem>>, %arg5: memref<1x128xf32, #tpu.memory_space<vmem>>) attributes {dimension_semantics = [#tpu.dimension_semantics<parallel>, #tpu.dimension_semantics<arbitrary>], iteration_bounds = array<i64: 2, 1>, scalar_prefetch = 0 : i64, scratch_operands = 1 : i64, tpu.core_type = #tpu.core_type<tc>, window_params = [{transform_indices = @transform_0, window_bounds = array<i64: 128, 256>}, {transform_indices = @transform_1, window_bounds = array<i64: 1, 256>}, {transform_indices = @transform_2, window_bounds = array<i64: 1, 128>}]} {
    %c0_i32 = arith.constant 0 : i32
    %0 = arith.cmpi eq, %arg1, %c0_i32 : i32
    %1 = arith.extui %0 : i1 to i32
    %c0_i32_0 = arith.constant 0 : i32
    %2 = arith.cmpi ne, %1, %c0_i32_0 : i32
    scf.if %2 {
      %cst_10 = arith.constant 0.000000e+00 : f32
      %12 = vector.broadcast %cst_10 : f32 to vector<1x128xf32>
      %c0_11 = arith.constant 0 : index
      %c0_12 = arith.constant 0 : index
      %13 = vector.load %arg5[%c0_11, %c0_12] : memref<1x128xf32, #tpu.memory_space<vmem>>, vector<1x128xf32>
      tpu.vector_store %arg5[%c0_11, %c0_12], %12 {strides = array<i32>} : memref<1x128xf32, #tpu.memory_space<vmem>>, vector<1x128xf32>,
    } else {
    }
    %c0 = arith.constant 0 : index
    %c0_1 = arith.constant 0 : index
    %3 = vector.load %arg5[%c0, %c0_1] : memref<1x128xf32, #tpu.memory_space<vmem>>, vector<1x128xf32>
    %c0_2 = arith.constant 0 : index
    %c0_3 = arith.constant 0 : index
    %4 = vector.load %arg3[%c0_2, %c0_3] : memref<1x256xf32, #tpu.memory_space<vmem>>, vector<1x256xf32>
    %c0_4 = arith.constant 0 : index
    %c0_5 = arith.constant 0 : index
    %5 = vector.load %arg2[%c0_4, %c0_5] : memref<128x256xf32, #tpu.memory_space<vmem>>, vector<128x256xf32>
    %cst = arith.constant dense<0.000000e+00> : vector<1x128xf32>
    %6 = tpu.matmul %4, %5, %cst {dimension_numbers = #tpu.dot_dimension_numbers<[1], [1], [0], [0], [0, 0, 1, 0], [], []>} : vector<1x256xf32>, vector<128x256xf32>, vector<1x128xf32> -> vector<1x128xf32>
    %7 = arith.addf %3, %6 : vector<1x128xf32>
    %c0_6 = arith.constant 0 : index
    %c0_7 = arith.constant 0 : index
    %8 = vector.load %arg5[%c0_6, %c0_7] : memref<1x128xf32, #tpu.memory_space<vmem>>, vector<1x128xf32>
    tpu.vector_store %arg5[%c0_6, %c0_7], %7 {strides = array<i32>} : memref<1x128xf32, #tpu.memory_space<vmem>>, vector<1x128xf32>,
    %c0_i32_8 = arith.constant 0 : i32
    %9 = arith.cmpi eq, %arg1, %c0_i32_8 : i32
    %10 = arith.extui %9 : i1 to i32
    %c0_i32_9 = arith.constant 0 : i32
    %11 = arith.cmpi ne, %10, %c0_i32_9 : i32
    scf.if %11 {
      %c0_10 = arith.constant 0 : index
      %c0_11 = arith.constant 0 : index
      %12 = vector.load %arg5[%c0_10, %c0_11] : memref<1x128xf32, #tpu.memory_space<vmem>>, vector<1x128xf32>
      %c0_12 = arith.constant 0 : index
      %c0_13 = arith.constant 0 : index
      %13 = vector.load %arg4[%c0_12, %c0_13] : memref<1x128xf32, #tpu.memory_space<vmem>>, vector<1x128xf32>
      tpu.vector_store %arg4[%c0_12, %c0_13], %12 {strides = array<i32>} : memref<1x128xf32, #tpu.memory_space<vmem>>, vector<1x128xf32>,
    } else {
    }
    return
  }
  func.func @transform_0(%arg0: i32, %arg1: i32) -> (i32, i32) {
    %c0_i32 = arith.constant 0 : i32
    return %arg0, %arg1 : i32, i32
  }
  func.func @transform_1(%arg0: i32, %arg1: i32) -> (i32, i32) {
    %c0_i32 = arith.constant 0 : i32
    %c0_i32_0 = arith.constant 0 : i32
    return %c0_i32, %arg1 : i32, i32
  }
  func.func @transform_2(%arg0: i32, %arg1: i32) -> (i32, i32) {
    %c0_i32 = arith.constant 0 : i32
    %c0_i32_0 = arith.constant 0 : i32
    return %c0_i32, %arg0 : i32, i32
  }
}

</mosaic_0001>

<llo_original>
// kernel: forward.1
$region0: #{forward.1}
  #allocation0 [shape = 'u32[]', space=smem, size = 0x4, offset = 0x4, fixed_abs, tag = 'smem constant byte address 0x4 - core index']
  #allocation1 [shape = 'u32[144,128]{1,0:T(1,128)}', space=vmem, size = 0x12000, scoped, tag = 'internal scratch']
  #allocation2 [shape = 'f32[1,128]{1,0:T(1,128)}', space=vmem, size = 0x200, scoped, tag = 'scratch operand']
  %s0 = inlined_call_operand.hbm [shape: f32[200,256], index: 0, kind: input, shape index: {}]
  %s1 = inlined_call_operand.vmem [shape: f32[1,256], index: 1, kind: input, shape index: {}]
  %s2 = inlined_call_operand.hbm [shape: f32[1,200], index: 2, kind: output, shape index: {}]
  %s3 = sld [smem:[#allocation0]]
  $region53: #{forward.1} parent=0
    _
  %s5 = ssub.s32 1, %s3
  %s6 = scalar_select 0, %s5, %s3
  $region1: #{forward.1} parent=0
    #allocation3 [shape = 'u8[262144]{0}', space=vmem, size = 0x40000, scoped, tag = 'input window, operand 0']
    #allocation4 [shape = 's32[2]{0}', space=sflag, size = 0x8, scoped, tag = 'scoped memory for forward.1']
    #allocation5 [shape = 's32[2]{0}', space=sflag, size = 0x8, scoped, tag = 'scoped memory for forward.1']
    #allocation6 [shape = 'u8[1024]{0}', space=vmem, size = 0x400, scoped, tag = 'output window, operand 0']
    %7 = vsyncpa [#allocation4], 0
    %s8 = scalar_lea.sflag [#allocation4], 1
    %9 = vsyncpa %s8, 0
    %10 = vsyncpa [#allocation5], 0
    %s11 = scalar_lea.sflag [#allocation5], 1
    %12 = vsyncpa %s11, 0
    loop: start=0, step=1, limit=4
    $region2: #{forward.1} parent=1 // loop_pre_header
      _
    $region3: #{forward.1} parent=1 // loop_header
      %s14 = sphi 0, %s18
      %p15 = scmp.ge.s32.totalorder %s14, 4
      %s21 = sphi 0, %s33
      %s22 = sphi 0, %s29
      %s23 = sphi 0, %s21
      %s24 = sphi 0, %s22
      %s25 = sphi 0, %s23
      %s26 = sphi 0, %s24
      %s38 = sphi 0, %s40
      %s41 = sphi 0, %s38
      %s42 = sphi 0, %s41
      %s58 = sphi 0, %s42
      %s64 = sphi 0, %s66
      %s67 = sphi 0, %s64
      %s68 = sphi 0, %s67
      %s84 = sphi 0, %s68
      %s90 = sphi 0, %s92
      %s93 = sphi 0, %s90
      %s94 = sphi 0, %s93
      %s110 = sphi 0, %s94
    $region4: #{forward.1} parent=1 // loop_header_branch
      %17 = sbr.rel (%p15) target = $region8
    $region5: #{forward.1} parent=1 // loop_body
      %s19 = ssub.s32 %s14, 1
      %s20 = ssub.s32 %s14, 2
      %s27 = sadd.s32 1, %s22
      %p28 = scmp.ge.s32.totalorder %s27, 1
      %s29 = scalar_select %p28, 0, %s27
      %s30 = sadd.s32 1, %s21
      %s31 = scalar_select %p28, %s30, %s21
      %p32 = scmp.ge.s32.totalorder %s31, 2
      %s33 = scalar_select %p32, 0, %s31
      %s34 = ssub.s32 %s21, %s33
      %s35 = ssub.s32 %s22, %s29
      %s36 = sor.u32 %s34, %s35
      %p37 = scmp.eq.s32.totalorder %s36, 0
      %s39 = sadd.s32 %s38, 1
      %s40 = scalar_select %p37, %s38, %s39
      %p43 = pneg %p37
      %p44 = scmp.eq.s32.totalorder %s14, 1
      %p45 = por %p43, %p44
      %p46 = scmp.ne.s32.totalorder %s38, %s41
      %p47 = scmp.eq.s32.totalorder %s14, 0
      %p48 = por %p46, %p47
      %p49 = scmp.ne.s32.totalorder %s38, %s41
      %p50 = scmp.eq.s32.totalorder %s19, 1
      %p51 = por %p49, %p50
      %p52 = scmp.ne.s32.totalorder %s41, %s42
      %p53 = scmp.eq.s32.totalorder %s19, 0
      %p54 = por %p52, %p53
      %p55 = scmp.ne.s32.totalorder %s41, %s42
      %p56 = scmp.eq.s32.totalorder %s20, 1
      %p57 = por %p55, %p56
      %p59 = scmp.ne.s32.totalorder %s42, %s58
      %p60 = scmp.eq.s32.totalorder %s20, 0
      %p61 = por %p59, %p60
      %s62 = ssub.s32 %s22, %s29
      %p63 = scmp.eq.s32.totalorder %s62, 0
      %s65 = sadd.s32 %s64, 1
      %s66 = scalar_select %p63, %s64, %s65
      %p69 = pneg %p63
      %p70 = scmp.eq.s32.totalorder %s14, 1
      %p71 = por %p69, %p70
      %p72 = scmp.ne.s32.totalorder %s64, %s67
      %p73 = scmp.eq.s32.totalorder %s14, 0
      %p74 = por %p72, %p73
      %p75 = scmp.ne.s32.totalorder %s64, %s67
      %p76 = scmp.eq.s32.totalorder %s19, 1
      %p77 = por %p75, %p76
      %p78 = scmp.ne.s32.totalorder %s67, %s68
      %p79 = scmp.eq.s32.totalorder %s19, 0
      %p80 = por %p78, %p79
      %p81 = scmp.ne.s32.totalorder %s67, %s68
      %p82 = scmp.eq.s32.totalorder %s20, 1
      %p83 = por %p81, %p82
      %p85 = scmp.ne.s32.totalorder %s68, %s84
      %p86 = scmp.eq.s32.totalorder %s20, 0
      %p87 = por %p85, %p86
      %s88 = ssub.s32 %s21, %s33
      %p89 = scmp.eq.s32.totalorder %s88, 0
      %s91 = sadd.s32 %s90, 1
      %s92 = scalar_select %p89, %s90, %s91
      %p95 = pneg %p89
      %p96 = scmp.eq.s32.totalorder %s14, 1
      %p97 = por %p95, %p96
      %p98 = scmp.ne.s32.totalorder %s90, %s93
      %p99 = scmp.eq.s32.totalorder %s14, 0
      %p100 = por %p98, %p99
      %p101 = scmp.ne.s32.totalorder %s90, %s93
      %p102 = scmp.eq.s32.totalorder %s19, 1
      %p103 = por %p101, %p102
      %p104 = scmp.ne.s32.totalorder %s93, %s94
      %p105 = scmp.eq.s32.totalorder %s19, 0
      %p106 = por %p104, %p105
      %p107 = scmp.ne.s32.totalorder %s93, %s94
      %p108 = scmp.eq.s32.totalorder %s20, 1
      %p109 = por %p107, %p108
      %p111 = scmp.ne.s32.totalorder %s94, %s110
      %p112 = scmp.eq.s32.totalorder %s20, 0
      %p113 = por %p111, %p112
      %p114 = scmp.le.s32.totalorder 1, %s14
      %p115 = scmp.lt.s32.totalorder %s14, 3
      %p116 = pnand %p114, %p115
      %p117 = pneg %p116
      // Predicated region
      $region9: #{forward.1} parent=5 // pred_check
        _
      $region10: #{forward.1} parent=5 // pred_check_branch
        %119 = sbr.rel (%p116) target = $region12
      $region11: #{forward.1} parent=5 // pred_region
        %s120 = ssub.s32 %s14, 1
        // Predicated region
        $region13: #{forward.1} parent=11 // pred_check
          %p121 = pneg %p80
        $region14: #{forward.1} parent=11 // pred_check_branch
          %123 = sbr.rel (%p121) target = $region16
        $region15: #{forward.1} parent=11 // pred_region
          %s124 = smul.u32 2, %s24
          %p125 = scmp.lt.s32.totalorder %s124, 1
          %s126 = scalar_select %p125, %s124, 1
          %s127 = scalar_lea.vmem %s1, %s126
          %s128 = smul.u32 2, %s24
        $region16: #{forward.1} parent=11 // pred_fallthru
          _
      $region12: #{forward.1} parent=5 // pred_fallthru
        _
      %p129 = scmp.lt.s32.totalorder %s14, 2
      // Predicated region
      $region17: #{forward.1} parent=5 // pred_check
        %p130 = pneg %p129
      $region18: #{forward.1} parent=5 // pred_check_branch
        %132 = sbr.rel (%p130) target = $region20
      $region19: #{forward.1} parent=5 // pred_region
        // Predicated region
        $region21: #{forward.1} parent=19 // pred_check
          %p133 = pneg %p48
        $region22: #{forward.1} parent=19 // pred_check_branch
          %135 = sbr.rel (%p133) target = $region24
        $region23: #{forward.1} parent=19 // pred_region
          %s136 = sand.u32 %s38, 1
          %s137 = scalar_lea.sflag [#allocation4], %s136
          %s138 = sand.u32 %s38, 1
          %s139 = smul.addr %s138, 256
          %s140 = scalar_lea.vmem [#allocation3], %s139
          %s141 = smul.u32 16, %s21
          %s142 = smul.u32 2, %s22
          %s143 = ssub.s32 25, %s141
          %p144 = scmp.lt.s32.totalorder %s143, 16
          %s145 = scalar_select %p144, %s143, 16
          %s146 = smul.u32 128, %s145
          %s147 = smul.u32 %s146, 2
          %s149 = ssub.s32 4096, %s147
          %150 = vsyncadd %s137, %s149
          %p151 = scmp.ne.s32.totalorder 0, %s147
          %s152 = smul.addr %s141, 2
          %s153 = sadd.s32 %s142, %s152
          %s154 = smul.addr %s153, 128
          %s155 = scalar_lea.hbm %s0, %s154
          %s156 = smul.u32 16, %s145
          %s157 = sshll.u32 %s140, 4
          %s158 = int_to_ptr.vmem [resolvable:$true] %s157
          %s159 = sshll.u32 %s156, 4
          %163 = dma.hbm_to_vmem [thread:$0]  (%p151), %s155, %s159, %s158, %s137, 256, 256, 16
        $region24: #{forward.1} parent=19 // pred_fallthru
          _
      $region20: #{forward.1} parent=5 // pred_fallthru
        _
      %p164 = scmp.le.s32.totalorder 1, %s14
      %p165 = scmp.lt.s32.totalorder %s14, 3
      %p166 = pnand %p164, %p165
      %p167 = pneg %p166
      // Predicated region
      $region25: #{forward.1} parent=5 // pred_check
        _
      $region26: #{forward.1} parent=5 // pred_check_branch
        %169 = sbr.rel (%p166) target = $region28
      $region27: #{forward.1} parent=5 // pred_region
        %s170 = ssub.s32 %s14, 1
        %s171 = sand.u32 %s41, 1
        %s172 = scalar_lea.sflag [#allocation4], %s171
        %s173 = sand.u32 %s41, 1
        %s174 = smul.addr %s173, 256
        %s175 = scalar_lea.vmem [#allocation3], %s174
        // Predicated region
        $region29: #{forward.1} parent=27 // pred_check
          %p176 = pneg %p54
        $region30: #{forward.1} parent=27 // pred_check_branch
          %178 = sbr.rel (%p176) target = $region32
        $region31: #{forward.1} parent=27 // pred_region
          %179 = dma.done %s172, 4096
        $region32: #{forward.1} parent=27 // pred_fallthru
          _
        %s180 = sand.u32 %s41, 1
        %s181 = scalar_lea.sflag [#allocation4], %s180
        %s182 = sand.u32 %s41, 1
        %s183 = smul.addr %s182, 256
        %s184 = scalar_lea.vmem [#allocation3], %s183
        %p185 = pneg %p54
        %p186 = pneg %p51
        %s187 = smul.u32 2, %s24
        %p188 = scmp.lt.s32.totalorder %s187, 1
        %s189 = scalar_select %p188, %s187, 1
        %s190 = scalar_lea.vmem %s1, %s189
        %p191 = pneg %p80
        %p192 = pneg %p77
        %p193 = pneg %p106
        %p194 = pneg %p103
        %s195 = sand.u32 %s93, 1
        %s196 = scalar_lea.sflag [#allocation5], %s195
        %s197 = sand.u32 %s93, 1
        %s198 = scalar_lea.vmem [#allocation6], %s197
        %s199 = smul.u32 16, %s23
        %s200 = smul.u32 2, %s24
        %s201 = ssub.s32 25, %s199
        %p202 = scmp.lt.s32.totalorder %s201, 16
        %s203 = scalar_select %p202, %s201, 16
        %s204 = smul.u32 128, %s203
        %s205 = smul.u32 %s204, 2
        %s206 = smul.u32 2, %s24
        %p207 = scmp.lt.s32.totalorder %s206, 1
        %s208 = scalar_select %p207, %s206, 1
        %s209 = scalar_lea.vmem %s1, %s208
        %s210 = smul.u32 2, %s24
        %p211 = scmp.eq.s32.totalorder %s24, 0
        // Predicated region
        $region33: #{forward.1} parent=27 // pred_check
          %p212 = pneg %p211
        $region34: #{forward.1} parent=27 // pred_check_branch
          %214 = sbr.rel (%p212) target = $region36
        $region35: #{forward.1} parent=27 // pred_region
          %215 = vst [vmem:[#allocation2] sm:$0x1] 0.0
        $region36: #{forward.1} parent=27 // pred_fallthru
          _
        %v216 = vld [vmem:[#allocation2] sm:$0x1]
        %v217 = vld [vmem:[%s209] sm:$0x3]
        %v218 = vld [vmem:[%s175] sm:$0xff]
        %v219 = vld [vmem:[%s175 + $0x8] sm:$0xff]
        %v220 = vld [vmem:[%s175 + $0x10] sm:$0xff]
        %v221 = vld [vmem:[%s175 + $0x18] sm:$0xff]
        %v222 = vld [vmem:[%s175 + $0x20] sm:$0xff]
        %v223 = vld [vmem:[%s175 + $0x28] sm:$0xff]
        %v224 = vld [vmem:[%s175 + $0x30] sm:$0xff]
        %v225 = vld [vmem:[%s175 + $0x38] sm:$0xff]
        %v226 = vld [vmem:[%s175 + $0x40] sm:$0xff]
        %v227 = vld [vmem:[%s175 + $0x48] sm:$0xff]
        %v228 = vld [vmem:[%s175 + $0x50] sm:$0xff]
        %v229 = vld [vmem:[%s175 + $0x58] sm:$0xff]
        %v230 = vld [vmem:[%s175 + $0x60] sm:$0xff]
        %v231 = vld [vmem:[%s175 + $0x68] sm:$0xff]
        %v232 = vld [vmem:[%s175 + $0x70] sm:$0xff]
        %v233 = vld [vmem:[%s175 + $0x78] sm:$0xff]
        %v234 = vld [vmem:[%s175 + $0x80] sm:$0xff]
        %v235 = vld [vmem:[%s175 + $0x88] sm:$0xff]
        %v236 = vld [vmem:[%s175 + $0x90] sm:$0xff]
        %v237 = vld [vmem:[%s175 + $0x98] sm:$0xff]
        %v238 = vld [vmem:[%s175 + $0xa0] sm:$0xff]
        %v239 = vld [vmem:[%s175 + $0xa8] sm:$0xff]
        %v240 = vld [vmem:[%s175 + $0xb0] sm:$0xff]
        %v241 = vld [vmem:[%s175 + $0xb8] sm:$0xff]
        %v242 = vld [vmem:[%s175 + $0xc0] sm:$0xff]
        %v243 = vld [vmem:[%s175 + $0xc8] sm:$0xff]
        %v244 = vld [vmem:[%s175 + $0xd0] sm:$0xff]
        %v245 = vld [vmem:[%s175 + $0xd8] sm:$0xff]
        %v246 = vld [vmem:[%s175 + $0xe0] sm:$0xff]
        %v247 = vld [vmem:[%s175 + $0xe8] sm:$0xff]
        %v248 = vld [vmem:[%s175 + $0xf0] sm:$0xff]
        %v249 = vld [vmem:[%s175 + $0xf8] sm:$0xff]
        %v251 = vlaneseq
        %v252 = vshrl.u32 %v251, 7
        %v253 = vsub.s32 0, %v252
        %v254 = vrot.slane %v217, %v253
        %v255 = vlaneseq
        %v256 = vshrl.u32 %v255, 7
        %v257 = vsub.s32 1, %v256
        %v258 = vrot.slane %v217, %v257
        %261 = vmatprep.subr.mxu0 %v219
        %262 = vmatpush1.xpose.msra.mxu0 %v218
        %263 = vmatprep.subr.mxu0 %v221
        %264 = vmatpush1.xpose.msra.mxu0 %v220
        %265 = vmatprep.subr.mxu0 %v223
        %266 = vmatpush1.xpose.msra.mxu0 %v222
        %267 = vmatprep.subr.mxu0 %v225
        %268 = vmatpush1.xpose.msra.mxu0 %v224
        %269 = vmatprep.subr.mxu0 %v227
        %270 = vmatpush1.xpose.msra.mxu0 %v226
        %271 = vmatprep.subr.mxu0 %v229
        %272 = vmatpush1.xpose.msra.mxu0 %v228
        %273 = vmatprep.subr.mxu0 %v231
        %274 = vmatpush1.xpose.msra.mxu0 %v230
        %275 = vmatprep.subr.mxu0 %v233
        %276 = vmatpush1.xpose.msra.mxu0 %v232
        %277 = vmatprep.subr.mxu0 %v235
        %278 = vmatpush1.xpose.msra.mxu0 %v234
        %279 = vmatprep.subr.mxu0 %v237
        %280 = vmatpush1.xpose.msra.mxu0 %v236
        %281 = vmatprep.subr.mxu0 %v239
        %282 = vmatpush1.xpose.msra.mxu0 %v238
        %283 = vmatprep.subr.mxu0 %v241
        %284 = vmatpush1.xpose.msra.mxu0 %v240
        %285 = vmatprep.subr.mxu0 %v243
        %286 = vmatpush1.xpose.msra.mxu0 %v242
        %287 = vmatprep.subr.mxu0 %v245
        %288 = vmatpush1.xpose.msra.mxu0 %v244
        %289 = vmatprep.subr.mxu0 %v247
        %290 = vmatpush1.xpose.msra.mxu0 %v246
        %291 = vmatprep.subr.mxu0 %v249
        %292 = vmatpush1.xpose.msra.mxu0 %v248
        %293 = vmatprep.subr.mxu0 0.0
        %294 = vmatpush1.xpose.msra.mxu0 0.0
        %295 = vmatprep.subr.mxu0 0.0
        %296 = vmatpush1.xpose.msra.mxu0 0.0
        %297 = vmatprep.subr.mxu0 0.0
        %298 = vmatpush1.xpose.msra.mxu0 0.0
        %299 = vmatprep.subr.mxu0 0.0
        %300 = vmatpush1.xpose.msra.mxu0 0.0
        %301 = vmatprep.subr.mxu0 0.0
        %302 = vmatpush1.xpose.msra.mxu0 0.0
        %303 = vmatprep.subr.mxu0 0.0
        %304 = vmatpush1.xpose.msra.mxu0 0.0
        %305 = vmatprep.subr.mxu0 0.0
        %306 = vmatpush1.xpose.msra.mxu0 0.0
        %307 = vmatprep.subr.mxu0 0.0
        %308 = vmatpush1.xpose.msra.mxu0 0.0
        %309 = vmatprep.subr.mxu0 0.0
        %310 = vmatpush1.xpose.msra.mxu0 0.0
        %311 = vmatprep.subr.mxu0 0.0
        %312 = vmatpush1.xpose.msra.mxu0 0.0
        %313 = vmatprep.subr.mxu0 0.0
        %314 = vmatpush1.xpose.msra.mxu0 0.0
        %315 = vmatprep.subr.mxu0 0.0
        %316 = vmatpush1.xpose.msra.mxu0 0.0
        %317 = vmatprep.subr.mxu0 0.0
        %318 = vmatpush1.xpose.msra.mxu0 0.0
        %319 = vmatprep.subr.mxu0 0.0
        %320 = vmatpush1.xpose.msra.mxu0 0.0
        %321 = vmatprep.subr.mxu0 0.0
        %322 = vmatpush1.xpose.msra.mxu0 0.0
        %323 = vmatprep.subr.mxu0 0.0
        %324 = vmatpush1.xpose.msra.mxu0 0.0
        %325 = vmatprep.mubr.f32.mxu0 %v258
        %326 = vmatmul.mubr.f32.gmra.mrb[0].mxu0 %v254
        %v327 = vpop.f32.mrb[0].mxu0
        %v328 = vadd.f32 0.0, %v327
        %v329 = vpop.f32.mrb[0].mxu0
        %330 = vdwg.mxu0
        %v331 = vadd.f32 %v216, %v328
        %332 = vst [vmem:[#allocation2] sm:$0x1] %v331
        // Predicated region
        $region37: #{forward.1} parent=27 // pred_check
          %p333 = pneg %p211
        $region38: #{forward.1} parent=27 // pred_check_branch
          %335 = sbr.rel (%p333) target = $region40
        $region39: #{forward.1} parent=27 // pred_region
          %v336 = vld [vmem:[#allocation2] sm:$0x1]
          %337 = vst [vmem:[%s198] sm:$0x1] %v336
        $region40: #{forward.1} parent=27 // pred_fallthru
          _
        %s338 = sand.u32 %s93, 1
        %s339 = scalar_lea.sflag [#allocation5], %s338
        %s340 = sand.u32 %s93, 1
        %s341 = scalar_lea.vmem [#allocation6], %s340
        // Predicated region
        $region41: #{forward.1} parent=27 // pred_check
          %p342 = pneg %p103
        $region42: #{forward.1} parent=27 // pred_check_branch
          %344 = sbr.rel (%p342) target = $region44
        $region43: #{forward.1} parent=27 // pred_region
          %s346 = ssub.s32 16, 16
          %347 = vsyncadd %s339, %s346
          %s348 = smul.addr %s23, 16
          %s349 = scalar_lea.hbm %s2, %s348
          %s351 = sshll.u32 %s341, 4
          %s352 = int_to_ptr.vmem [resolvable:$true] %s351
          %354 = dma.vmem_to_hbm [thread:$0]  %s352, 16, %s349, %s339
        $region44: #{forward.1} parent=27 // pred_fallthru
          _
      $region28: #{forward.1} parent=5 // pred_fallthru
        _
      %p355 = scmp.le.s32.totalorder 2, %s14
      // Predicated region
      $region45: #{forward.1} parent=5 // pred_check
        %p356 = pneg %p355
      $region46: #{forward.1} parent=5 // pred_check_branch
        %358 = sbr.rel (%p356) target = $region48
      $region47: #{forward.1} parent=5 // pred_region
        %s359 = ssub.s32 %s14, 2
        // Predicated region
        $region49: #{forward.1} parent=47 // pred_check
          %p360 = pneg %p109
        $region50: #{forward.1} parent=47 // pred_check_branch
          %362 = sbr.rel (%p360) target = $region52
        $region51: #{forward.1} parent=47 // pred_region
          %s363 = sand.u32 %s94, 1
          %s364 = scalar_lea.sflag [#allocation5], %s363
          %s365 = sand.u32 %s94, 1
          %s366 = scalar_lea.vmem [#allocation6], %s365
          %367 = dma.done %s364, 16
        $region52: #{forward.1} parent=47 // pred_fallthru
          _
      $region48: #{forward.1} parent=5 // pred_fallthru
        _
    $region6: #{forward.1} parent=1 // loop_footer
      %s18 = sadd.s32 1, %s14
    $region7: #{forward.1} parent=1 // loop_footer_branch
      %13 = sbr.rel target = $region3
    $region8: #{forward.1} parent=1 // loop_exit
      _
    %368 = vsyncpa [#allocation4], 1
    %s369 = scalar_lea.sflag [#allocation4], 1
    %370 = vsyncpa %s369, 1
    %371 = vsyncpa [#allocation5], 1
    %s372 = scalar_lea.sflag [#allocation5], 1
    %373 = vsyncpa %s372, 1

</llo_original>
